<compile_context>
chip_gen: v7x
topology: tpu7x:2x2x1
jax: 0.10.0
libtpu: 0.0.40
codegen_flags: <defaults>
</compile_context>

<pallas_src>
import math

import jax
import jax.numpy as jnp
import numpy as np
from jax.experimental import pallas as pl
from jax.experimental.pallas import tpu as pltpu


# ---------------------------------------------------------------------------
# Plain-JAX table setup: mirrors XPOS.__init__'s 'scale' buffer plus
# fixed_pos_embedding / duplicate_interleave (depends only on shape/offset flags).
# ---------------------------------------------------------------------------
def _duplicate_interleave(m):
    # (L, D/2) -> (L, D): each column repeated twice, interleaved (== torch version)
    return jnp.repeat(m, 2, axis=-1)


def xpos_tables(length, head_dim, offset=0, scale_base=512, downscale=False):
    # register_buffer('scale', (arange(0, D, 2) + 0.4*D) / (1.4*D))
    scale_buf = (jnp.arange(0, head_dim, 2, dtype=jnp.float32) + 0.4 * head_dim) / (1.4 * head_dim)
    min_pos = -(length + offset) // 2          # static python floor division (matches torch)
    max_pos = length + offset + min_pos
    positions = jnp.arange(min_pos, max_pos, dtype=jnp.float32)           # (length+offset,)
    scale = scale_buf[None, :] ** (positions / scale_base)[:, None]       # (length+offset, D/2)

    # fixed_pos_embedding(scale)
    seq_len, dim = scale.shape
    inv_freq = 1.0 / (10000.0 ** (jnp.arange(0, dim, dtype=jnp.float32) / dim))
    sinusoid = jnp.arange(0, seq_len, dtype=jnp.float32)[:, None] * inv_freq[None, :]
    sin, cos = jnp.sin(sinusoid), jnp.cos(sinusoid)

    if seq_len > length:
        scale, sin, cos = scale[-length:], sin[-length:], cos[-length:]
    if downscale:
        scale = 1.0 / scale

    sin_d = _duplicate_interleave(sin * scale)   # (length, head_dim)
    cos_d = _duplicate_interleave(cos * scale)   # (length, head_dim)
    return sin_d.astype(jnp.float32), cos_d.astype(jnp.float32)


# ---------------------------------------------------------------------------
# Pallas kernel: elementwise x*cos + rotate_every_two(x)*sin on a
# (Bt, tile_rows, C) block.  Tables arrive packed as one (2, tile_rows, C) block.
# rotate_every_two maps each lane pair (a, b) -> (-b, a): two lane rotations (XLU)
# plus an even/odd lane select.  The wrap-around lanes of each roll land on the
# opposite parity and are masked by the select (C is even), so the trick is safe.
# ---------------------------------------------------------------------------
def _xpos_kernel(x_ref, tab_ref, o_ref):
    sin = tab_ref[0].astype(jnp.float32)     # (tile_rows, C)
    cos = tab_ref[1].astype(jnp.float32)     # (tile_rows, C)
    C = sin.shape[-1]
    lane = jax.lax.broadcasted_iota(jnp.int32, sin.shape, dimension=1)
    is_even = (lane & 1) == 0

    def rows(x2d):
        x = x2d.astype(jnp.float32)                      # (tile_rows, C)
        left = pltpu.roll(x, shift=C - 1, axis=1)        # left[c]  = x[c+1 mod C]
        right = pltpu.roll(x, shift=1, axis=1)           # right[c] = x[c-1 mod C]
        x_rot = jnp.where(is_even, -left, right)         # rotate_every_two(x)
        return (x * cos + x_rot * sin).astype(o_ref.dtype)

    bt = x_ref.shape[0]
    if bt == 1:
        o_ref[0] = rows(x_ref[0])
    else:
        @pl.loop(0, bt)
        def _(i):
            o_ref[i] = rows(x_ref[i])


def xpos_forward(x, offset=0, downscale=False, scale_base=512):
    B, L, D = x.shape
    assert D % 2 == 0, "XPOS head_dim must be even"
    sin_d, cos_d = xpos_tables(L, D, offset=offset, scale_base=scale_base, downscale=downscale)

    # ---- lane-dense folding: pack `fold` consecutive positions into one lane-dense row.
    # fold = 128 // gcd(D, 128)  =>  C = fold*D is always a multiple of 128 for even D.
    fold = 128 // math.gcd(D, 128)
    C = fold * D
    L_pad = pl.cdiv(L, fold) * fold
    if L_pad != L:
        pad = L_pad - L
        x = jnp.pad(x, ((0, 0), (0, pad), (0, 0)))
        sin_d = jnp.pad(sin_d, ((0, pad), (0, 0)))
        cos_d = jnp.pad(cos_d, ((0, pad), (0, 0)))
    R = L_pad // fold            # folded row count

    x_f = x.reshape(B, R, C)     # row-major regroup: `fold` consecutive positions per row

    # Packed sin/cos table: single (2, R, C) array -> one DMA per row-tile.
    # Keep f32 tables for f32 inputs (tight numerics); match x.dtype for bf16/f16.
    if x.dtype in (jnp.dtype(jnp.bfloat16), jnp.dtype(jnp.float16)):
        tab_dtype = x.dtype
    else:
        tab_dtype = jnp.float32
    tab = jnp.stack([sin_d.reshape(R, C), cos_d.reshape(R, C)]).astype(tab_dtype)   # (2, R, C)

    # ---- tiling: keep double-buffered (x + out + sin + cos) working set ~<= 12 MiB ----
    itemsize = np.dtype(x.dtype).itemsize
    tab_itemsize = np.dtype(tab_dtype).itemsize
    xo_row = C * 2 * itemsize            # x + out bytes per (batch-elem, folded-row)
    tab_row = C * 2 * tab_itemsize       # sin + cos bytes per folded row
    budget = 12 * 1024 * 1024

    max_rows = max(8, budget // (2 * (xo_row + tab_row)))   # assuming Bt=1, double-buffered
    if R > max_rows:
        tile_rows = max(8, (max_rows // 8) * 8)   # sublane-aligned; edge tile masked
        Bt = 1
    else:
        tile_rows = R                             # full extent (exempt from %8 rule)
        # widen over batch with the leftover budget (tables move once per step regardless)
        per_batch = 2 * R * xo_row                # double-buffered x+out for one batch element
        leftover = budget - 2 * R * tab_row
        Bt = int(max(1, min(B, leftover // max(per_batch, 1))))
    n_r = pl.cdiv(R, tile_rows)
    n_b = pl.cdiv(B, Bt)

    working = 2 * tile_rows * (Bt * xo_row + tab_row)       # double-buffered working set
    vmem_limit = int(min(max(working + (4 << 20), 8 << 20), 32 << 20))

    out_f = pl.pallas_call(
        _xpos_kernel,
        out_shape=jax.ShapeDtypeStruct((B, R, C), x.dtype),
        grid_spec=pltpu.PrefetchScalarGridSpec(
            num_scalar_prefetch=0,
            # b is the innermost (fastest) axis: the table block index is constant in b,
            # so each table tile is DMA'd once per row-tile instead of once per (r, b).
            grid=(n_r, n_b),
            in_specs=[
                pl.BlockSpec((Bt, tile_rows, C), lambda r, b: (b, r, 0)),   # x
                pl.BlockSpec((2, tile_rows, C), lambda r, b: (0, r, 0)),    # packed sin/cos
            ],
            out_specs=pl.BlockSpec((Bt, tile_rows, C), lambda r, b: (b, r, 0)),
        ),
        compiler_params=pltpu.CompilerParams(
            # Pin megacore sharding to the row axis (b arbitrary) so both v7x TCs don't
            # each re-read the full sin/cos tables.
            dimension_semantics=("parallel", "arbitrary"),
            vmem_limit_bytes=vmem_limit,
        ),
    )(x_f, tab)

    out = out_f.reshape(B, L_pad, D)
    if L_pad != L:
        out = out[:, :L, :]
    return out


# ---------------------------------------------------------------------------
# Pure-JAX reference (faithful transcription of the PyTorch code) for checking.
# ---------------------------------------------------------------------------
def _xpos_reference(x, offset=0, downscale=False, scale_base=512):
    B, L, D = x.shape
    sin_d, cos_d = xpos_tables(L, D, offset=offset, scale_base=scale_base, downscale=downscale)
    x1 = x[:, :, 0::2]
    x2 = x[:, :, 1::2]
    x_rot = jnp.stack((-x2, x1), axis=-1).reshape(B, L, D)
    return x * cos_d[None] + x_rot * sin_d[None]


if __name__ == "__main__":
    key = jax.random.PRNGKey(0)
    k1, k2, k3 = jax.random.split(key, 3)

    # main check: batch=2, seq=8, head_dim=32  (fold=4 -> 128 lanes, batch-widened step)
    B, L, D = 2, 8, 32
    x = jax.random.normal(k1, (B, L, D), dtype=jnp.float32)
    out = jax.block_until_ready(xpos_forward(x, offset=0, downscale=False))
    ref = _xpos_reference(x, offset=0, downscale=False)
    np.testing.assert_allclose(np.asarray(out), np.asarray(ref), rtol=1e-5, atol=1e-5)

    # second check: offset / downscale branches and a different fold factor (fold=2)
    x2 = jax.random.normal(k2, (1, 16, 64), dtype=jnp.float32)
    out2 = jax.block_until_ready(xpos_forward(x2, offset=4, downscale=True))
    ref2 = _xpos_reference(x2, offset=4, downscale=True)
    np.testing.assert_allclose(np.asarray(out2), np.asarray(ref2), rtol=1e-5, atol=1e-5)

    # third check: generalized fold (D=80 -> fold=8, C=640) with L not divisible by fold
    x3 = jax.random.normal(k3, (3, 10, 80), dtype=jnp.float32)
    out3 = jax.block_until_ready(xpos_forward(x3, offset=2, downscale=False))
    ref3 = _xpos_reference(x3, offset=2, downscale=False)
    np.testing.assert_allclose(np.asarray(out3), np.asarray(ref3), rtol=1e-5, atol=1e-5)

    print("KERNEL_OK")
</pallas_src>

<mosaic_0001>
module attributes {stable_mosaic.version = 11 : i64} {
  func.func @_xpos_kernel(%arg0: i32, %arg1: i32, %arg2: memref<2x2x128xf32, #tpu.memory_space<vmem>>, %arg3: memref<2x2x128xf32, #tpu.memory_space<vmem>>, %arg4: memref<2x2x128xf32, #tpu.memory_space<vmem>>) attributes {dimension_semantics = [#tpu.dimension_semantics<parallel>, #tpu.dimension_semantics<arbitrary>], iteration_bounds = array<i64: 1, 1>, scalar_prefetch = 0 : i64, scratch_operands = 0 : i64, tpu.core_type = #tpu.core_type<tc>, window_params = [{transform_indices = @transform_0, window_bounds = array<i64: 2, 2, 128>}, {transform_indices = @transform_1, window_bounds = array<i64: 2, 2, 128>}, {transform_indices = @transform_2, window_bounds = array<i64: 2, 2, 128>}]} {
    %c0 = arith.constant 0 : index
    %c0_0 = arith.constant 0 : index
    %c0_1 = arith.constant 0 : index
    %0 = vector.load %arg3[%c0, %c0_0, %c0_1] : memref<2x2x128xf32, #tpu.memory_space<vmem>>, vector<1x2x128xf32>
    %1 = vector.shape_cast %0 : vector<1x2x128xf32> to vector<2x128xf32>
    %c1 = arith.constant 1 : index
    %c0_2 = arith.constant 0 : index
    %c0_3 = arith.constant 0 : index
    %2 = vector.load %arg3[%c1, %c0_2, %c0_3] : memref<2x2x128xf32, #tpu.memory_space<vmem>>, vector<1x2x128xf32>
    %3 = vector.shape_cast %2 : vector<1x2x128xf32> to vector<2x128xf32>
    %4 = tpu.iota {dimensions = array<i32: 1>} : vector<2x128xi32>
    %c1_i32 = arith.constant 1 : i32
    %5 = vector.broadcast %c1_i32 : i32 to vector<2x128xi32>
    %6 = arith.andi %4, %5 : vector<2x128xi32>
    %c0_i32 = arith.constant 0 : i32
    %7 = vector.broadcast %c0_i32 : i32 to vector<2x128xi32>
    %8 = arith.cmpi eq, %6, %7 : vector<2x128xi32>
    %c0_i32_4 = arith.constant 0 : i32
    %c2_i32 = arith.constant 2 : i32
    %9 = arith.addi %c0_i32_4, %c2_i32 : i32
    %c1_i32_5 = arith.constant 1 : i32
    scf.for %arg5 = %c0_i32_4 to %9 step %c1_i32_5  : i32 {
      %c1_i32_7 = arith.constant 1 : i32
      %10 = arith.muli %arg5, %c1_i32_7 : i32
      %c0_i32_8 = arith.constant 0 : i32
      %11 = arith.addi %c0_i32_8, %10 : i32
      %12 = arith.index_cast %11 : i32 to index
      %c0_9 = arith.constant 0 : index
      %c0_10 = arith.constant 0 : index
      %13 = vector.load %arg2[%12, %c0_9, %c0_10] : memref<2x2x128xf32, #tpu.memory_space<vmem>>, vector<1x2x128xf32>
      %14 = vector.shape_cast %13 : vector<1x2x128xf32> to vector<2x128xf32>
      %c127_i32 = arith.constant 127 : i32
      %15 = tpu.dynamic_rotate %14 by %c127_i32 dim 1 : vector<2x128xf32>, i32 -> vector<2x128xf32>
      %c1_i32_11 = arith.constant 1 : i32
      %16 = tpu.dynamic_rotate %14 by %c1_i32_11 dim 1 : vector<2x128xf32>, i32 -> vector<2x128xf32>
      %cst = arith.constant 0.000000e+00 : f32
      %17 = vector.broadcast %cst : f32 to vector<2x128xf32>
      %18 = arith.subf %17, %15 : vector<2x128xf32>
      %19 = arith.select %8, %18, %16 : vector<2x128xi1>, vector<2x128xf32>
      %20 = arith.mulf %14, %3 : vector<2x128xf32>
      %21 = arith.mulf %19, %1 : vector<2x128xf32>
      %22 = arith.addf %20, %21 : vector<2x128xf32>
      %23 = arith.index_cast %11 : i32 to index
      %c0_12 = arith.constant 0 : index
      %c0_13 = arith.constant 0 : index
      %24 = vector.load %arg4[%23, %c0_12, %c0_13] : memref<2x2x128xf32, #tpu.memory_space<vmem>>, vector<1x2x128xf32>
      %25 = vector.shape_cast %24 : vector<1x2x128xf32> to vector<2x128xf32>
      %26 = vector.shape_cast %22 : vector<2x128xf32> to vector<1x2x128xf32>
      tpu.vector_store %arg4[%23, %c0_12, %c0_13], %26 {strides = array<i32>} : memref<2x2x128xf32, #tpu.memory_space<vmem>>, vector<1x2x128xf32>,
    }
    %c2_i32_6 = arith.constant 2 : i32
    return
  }
  func.func @transform_0(%arg0: i32, %arg1: i32) -> (i32, i32, i32) {
    %c0_i32 = arith.constant 0 : i32
    %c0_i32_0 = arith.constant 0 : i32
    return %arg1, %arg0, %c0_i32 : i32, i32, i32
  }
  func.func @transform_1(%arg0: i32, %arg1: i32) -> (i32, i32, i32) {
    %c0_i32 = arith.constant 0 : i32
    %c0_i32_0 = arith.constant 0 : i32
    %c0_i32_1 = arith.constant 0 : i32
    return %c0_i32, %arg0, %c0_i32_0 : i32, i32, i32
  }
  func.func @transform_2(%arg0: i32, %arg1: i32) -> (i32, i32, i32) {
    %c0_i32 = arith.constant 0 : i32
    %c0_i32_0 = arith.constant 0 : i32
    return %arg1, %arg0, %c0_i32 : i32, i32, i32
  }
}

</mosaic_0001>

<llo_original>
// kernel: tpu_custom_call.1
$region0: #{tpu_custom_call.1}
  #allocation0 [shape = 'u32[]', space=smem, size = 0x4, offset = 0x4, fixed_abs, tag = 'smem constant byte address 0x4 - core index']
  #allocation1 [shape = 'u32[144,128]{1,0:T(1,128)}', space=vmem, size = 0x12000, scoped, tag = 'internal scratch']
  %s0 = inlined_call_operand.hbm [shape: f32[2,2,128], index: 0, kind: input, shape index: {}]
  %s1 = inlined_call_operand.hbm [shape: f32[2,2,128], index: 1, kind: input, shape index: {}]
  %s2 = inlined_call_operand.hbm [shape: f32[2,2,128], index: 2, kind: output, shape index: {}]
  %s3 = sld [smem:[#allocation0]]
  $region33: #{tpu_custom_call.1} parent=0
    _
  %s5 = ssub.s32 1, %s3
  %s6 = scalar_select 0, %s5, %s3
  $region1: #{tpu_custom_call.1} parent=0
    #allocation2 [shape = 'u8[2048]{0}', space=vmem, size = 0x800, scoped, tag = 'input window, operand 0, single buffered']
    #allocation3 [shape = 's32[1]{0}', space=sflag, size = 0x4, scoped, tag = 'scoped memory for tpu_custom_call.1']
    #allocation4 [shape = 's32[1]{0}', space=sflag, size = 0x4, scoped, tag = 'scoped memory for tpu_custom_call.1']
    #allocation5 [shape = 'u8[2048]{0}', space=vmem, size = 0x800, scoped, tag = 'input window, operand 1, single buffered']
    #allocation6 [shape = 's32[1]{0}', space=sflag, size = 0x4, scoped, tag = 'scoped memory for tpu_custom_call.1']
    #allocation7 [shape = 'u8[2048]{0}', space=vmem, size = 0x800, scoped, tag = 'output window, operand 0, single buffered']
    %7 = vsyncpa [#allocation3], 0
    %8 = vsyncpa [#allocation6], 0
    %9 = vsyncpa [#allocation4], 0
    // Predicated region
    $region2: #{tpu_custom_call.1} parent=1 // pred_check
      _
    $region3: #{tpu_custom_call.1} parent=1 // pred_check_branch
      %11 = sbr.rel (0) target = $region5
    $region4: #{tpu_custom_call.1} parent=1 // pred_region
      %s13 = ssub.s32 64, 64
      %14 = vsyncadd [#allocation3], %s13
      %s15 = sshll.u32 [#allocation2], 4
      %s16 = int_to_ptr.vmem [resolvable:$true] %s15
      %21 = dma.hbm_to_vmem [thread:$0]  %s0, 64, %s16, [#allocation3], 32, 32, 2
    $region5: #{tpu_custom_call.1} parent=1 // pred_fallthru
      _
    // Predicated region
    $region6: #{tpu_custom_call.1} parent=1 // pred_check
      _
    $region7: #{tpu_custom_call.1} parent=1 // pred_check_branch
      %23 = sbr.rel (0) target = $region9
    $region8: #{tpu_custom_call.1} parent=1 // pred_region
      %s25 = ssub.s32 64, 64
      %26 = vsyncadd [#allocation6], %s25
      %s27 = sshll.u32 [#allocation5], 4
      %s28 = int_to_ptr.vmem [resolvable:$true] %s27
      %33 = dma.hbm_to_vmem [thread:$0]  %s1, 64, %s28, [#allocation6], 32, 32, 2
    $region9: #{tpu_custom_call.1} parent=1 // pred_fallthru
      _
    // Predicated region
    $region10: #{tpu_custom_call.1} parent=1 // pred_check
      _
    $region11: #{tpu_custom_call.1} parent=1 // pred_check_branch
      %35 = sbr.rel (0) target = $region13
    $region12: #{tpu_custom_call.1} parent=1 // pred_region
      %36 = dma.done [#allocation3], 64
    $region13: #{tpu_custom_call.1} parent=1 // pred_fallthru
      _
    // Predicated region
    $region14: #{tpu_custom_call.1} parent=1 // pred_check
      _
    $region15: #{tpu_custom_call.1} parent=1 // pred_check_branch
      %38 = sbr.rel (0) target = $region17
    $region16: #{tpu_custom_call.1} parent=1 // pred_region
      %39 = dma.done [#allocation6], 64
    $region17: #{tpu_custom_call.1} parent=1 // pred_fallthru
      _
    %v40 = vld [vmem:[#allocation5] sm:$0x3]
    %s41 = scalar_lea.vmem [#allocation5], 2
    %v42 = vld [vmem:[%s41] sm:$0x3]
    %v43 = vlaneseq
    %v44 = vand.u32 %v43, 127
    %v45 = vand.u32 %v44, 1
    %vm46 = vcmp.eq.s32.totalorder %v45, 0
    loop: start=0, step=1, limit=2
    $region18: #{tpu_custom_call.1} parent=1 // loop_pre_header
      _
    $region19: #{tpu_custom_call.1} parent=1 // loop_header
      %s48 = sphi 0, %s52
      %p49 = scmp.ge.s32.totalorder %s48, 2
    $region20: #{tpu_custom_call.1} parent=1 // loop_header_branch
      %51 = sbr.rel (%p49) target = $region24
    $region21: #{tpu_custom_call.1} parent=1 // loop_body
      %s53 = smul.u32 %s48, 2
      %s54 = scalar_lea.vmem [#allocation2], %s53
      %v55 = vld [vmem:[%s54] sm:$0x3]
      %56 = vrot.lane.b32.xlu0 %v55, 127
      %v57 = vpop.permute.xlu0 %56
      %58 = vrot.lane.b32.xlu0 %v55, 1
      %v59 = vpop.permute.xlu0 %58
      %v60 = vsub.f32 0.0, %v57
      %v61 = vsel %vm46, %v60, %v59
      %v62 = vmul.f32 %v55, %v42
      %v63 = vmul.f32 %v61, %v40
      %v64 = vadd.f32 %v62, %v63
      %s65 = scalar_lea.vmem [#allocation7], %s53
      %66 = vst [vmem:[%s65] sm:$0x3] %v64
    $region22: #{tpu_custom_call.1} parent=1 // loop_footer
      %s52 = sadd.s32 1, %s48
    $region23: #{tpu_custom_call.1} parent=1 // loop_footer_branch
      %47 = sbr.rel target = $region19
    $region24: #{tpu_custom_call.1} parent=1 // loop_exit
      _
    // Predicated region
    $region25: #{tpu_custom_call.1} parent=1 // pred_check
      _
    $region26: #{tpu_custom_call.1} parent=1 // pred_check_branch
      %68 = sbr.rel (0) target = $region28
    $region27: #{tpu_custom_call.1} parent=1 // pred_region
      %s70 = ssub.s32 64, 64
      %71 = vsyncadd [#allocation4], %s70
      %s72 = sshll.u32 [#allocation7], 4
      %s73 = int_to_ptr.vmem [resolvable:$true] %s72
      %78 = dma.vmem_to_hbm [thread:$0]  %s73, 64, %s2, [#allocation4], 32, 32, 2
    $region28: #{tpu_custom_call.1} parent=1 // pred_fallthru
      _
    // Predicated region
    $region29: #{tpu_custom_call.1} parent=1 // pred_check
      _
    $region30: #{tpu_custom_call.1} parent=1 // pred_check_branch
      %80 = sbr.rel (0) target = $region32
    $region31: #{tpu_custom_call.1} parent=1 // pred_region
      %81 = dma.done [#allocation4], 64
    $region32: #{tpu_custom_call.1} parent=1 // pred_fallthru
      _
    %82 = vsyncpa [#allocation3], 1
    %83 = vsyncpa [#allocation6], 1
    %84 = vsyncpa [#allocation4], 1

</llo_original>
